<compile_context>
chip_gen: v7x
topology: tpu7x:2x2x1
jax: 0.10.0
libtpu: 0.0.40
codegen_flags: <defaults>
</compile_context>

<pallas_src>
import jax
import jax.numpy as jnp
from jax import lax
from jax.experimental import pallas as pl
from jax.experimental.pallas import tpu as pltpu


def _cdiv(a, b):
    return -(-a // b)


def _round_up(n, m):
    return ((n + m - 1) // m) * m


def mlp_kernel(x_ref,
               w1_ref, b1_ref,
               w2_ref, b2_ref,
               w3_ref, b3_ref,
               w4_ref, b4_ref,
               o_ref):
    # x_ref: [TB, 15] batch-major tile (exactly as stored in HBM).
    # W_l:   [out, in] (PyTorch layout), b_l: [out, 1].
    # All intermediates are feature-major [out, TB] -> lane dim = batch tile.
    x = x_ref[...]

    # fc1 + relu: contract the feature axes of W1 [32,15] and x [TB,15]
    # (rhs-transposed MXU matmul) -> [32, TB].
    h = lax.dot_general(w1_ref[...], x, (((1,), (1,)), ((), ())),
                        preferred_element_type=jnp.float32)
    h = jnp.maximum(h + b1_ref[...], 0.0)

    # fc2 + relu -> [64, TB]
    h = jnp.dot(w2_ref[...], h, preferred_element_type=jnp.float32)
    h = jnp.maximum(h + b2_ref[...], 0.0)

    # fc3 + relu -> [64, TB]
    h = jnp.dot(w3_ref[...], h, preferred_element_type=jnp.float32)
    h = jnp.maximum(h + b3_ref[...], 0.0)

    # classifier (padded to 8 rows; rows 2..7 are zero weights/bias) -> [8, TB]
    h = jnp.dot(w4_ref[...], h, preferred_element_type=jnp.float32)
    o_ref[...] = (h + b4_ref[...]).astype(o_ref.dtype)


def net_forward(x, params, *, tile_b=16384):
    """x: [B, 15] float32; params: PyTorch-layout weights [out, in], biases [out, 1]."""
    B, F = x.shape
    assert F == 15
    tile_b = max(128, tile_b)

    w1, b1 = params["w1"], params["b1"]
    w2, b2 = params["w2"], params["b2"]
    w3, b3 = params["w3"], params["b3"]
    w4, b4 = params["w4"], params["b4"]

    # Pad the 2-row classifier to 8 rows: full-sublane, unmasked output stores.
    out_rows = 8
    w4p = jnp.pad(w4, ((0, out_rows - w4.shape[0]), (0, 0)))
    b4p = jnp.pad(b4, ((0, out_rows - b4.shape[0]), (0, 0)))

    # Balanced tile selection: bound per-tile padding to <128 columns and,
    # on v7x, make sure both TensorCores get at least one grid step.
    num_tiles = max(1, _cdiv(B, tile_b))
    if B > 128:
        num_tiles = max(num_tiles, 2)
    tb = _round_up(_cdiv(B, num_tiles), 128)
    num_tiles = _cdiv(max(B, tb), tb)

    # Only the degenerate B < tb (i.e. B < 128) case needs a host-side pad;
    # otherwise the ragged last tile is handled by Pallas block clipping
    # (no extra HBM pass over x).
    if B < tb:
        x_in = jnp.pad(x, ((0, tb - B), (0, 0)))
        b_cols = tb
    else:
        x_in = x
        b_cols = B

    def const_spec(shape):
        # Constant block index -> DMA'd once, stays VMEM-resident across the grid.
        return pl.BlockSpec(shape, lambda i: (0, 0))

    out = pl.pallas_call(
        mlp_kernel,
        out_shape=jax.ShapeDtypeStruct((out_rows, b_cols), jnp.float32),
        grid=(num_tiles,),
        in_specs=[
            pl.BlockSpec((tb, 15), lambda i: (i, 0)),        # x streams batch-major
            const_spec(w1.shape), const_spec(b1.shape),
            const_spec(w2.shape), const_spec(b2.shape),
            const_spec(w3.shape), const_spec(b3.shape),
            const_spec(w4p.shape), const_spec(b4p.shape),
        ],
        out_specs=pl.BlockSpec((out_rows, tb), lambda i: (0, i)),  # lane-dense output
        compiler_params=pltpu.CompilerParams(
            dimension_semantics=("parallel",),               # v7x: 2 TCs split batch
            vmem_limit_bytes=48 * 1024 * 1024,               # headroom for tb=16384
        ),
    )(x_in, w1, b1, w2, b2, w3, b3, w4p, b4p)

    return out[:2, :B].T                                      # back to [B, 2]


def init_params(key):
    """Deterministic init matching nn.Linear: W as [out, in], b as [out, 1]."""
    dims = [(15, 32), (32, 64), (64, 64), (64, 2)]
    params = {}
    for i, (fan_in, fan_out) in enumerate(dims, start=1):
        key, kw, kb = jax.random.split(key, 3)
        bound = 1.0 / jnp.sqrt(fan_in)
        params[f"w{i}"] = jax.random.uniform(
            kw, (fan_out, fan_in), jnp.float32, -bound, bound)
        params[f"b{i}"] = jax.random.uniform(
            kb, (fan_out, 1), jnp.float32, -bound, bound)
    return params


def reference_forward(x, params):
    h = jnp.maximum(x @ params["w1"].T + params["b1"].T, 0.0)
    h = jnp.maximum(h @ params["w2"].T + params["b2"].T, 0.0)
    h = jnp.maximum(h @ params["w3"].T + params["b3"].T, 0.0)
    return h @ params["w4"].T + params["b4"].T


if __name__ == "__main__":
    key = jax.random.PRNGKey(0)
    pkey, xkey = jax.random.split(key)
    params = init_params(pkey)

    # Small single-tile batch.
    B = 8
    x = jax.random.normal(xkey, (B, 15), jnp.float32)
    out = jax.block_until_ready(net_forward(x, params))
    ref = reference_forward(x, params)
    assert out.shape == (B, 2)
    assert jnp.allclose(out, ref, atol=1e-5, rtol=1e-5), "mismatch vs reference (B=8)"

    # Multi-tile, non-divisible batch: exercises 2 grid steps + ragged last tile.
    B2 = 300
    x2 = jax.random.normal(jax.random.PRNGKey(1), (B2, 15), jnp.float32)
    out2 = jax.block_until_ready(net_forward(x2, params))
    ref2 = reference_forward(x2, params)
    assert out2.shape == (B2, 2)
    assert jnp.allclose(out2, ref2, atol=1e-5, rtol=1e-5), "mismatch vs reference (B=300)"

    print("KERNEL_OK")
</pallas_src>

<mosaic_0001>
module attributes {stable_mosaic.version = 11 : i64} {
  func.func @mlp_kernel(%arg0: i32, %arg1: memref<128x15xf32, #tpu.memory_space<vmem>>, %arg2: memref<32x15xf32, #tpu.memory_space<vmem>>, %arg3: memref<32x1xf32, #tpu.memory_space<vmem>>, %arg4: memref<64x32xf32, #tpu.memory_space<vmem>>, %arg5: memref<64x1xf32, #tpu.memory_space<vmem>>, %arg6: memref<64x64xf32, #tpu.memory_space<vmem>>, %arg7: memref<64x1xf32, #tpu.memory_space<vmem>>, %arg8: memref<8x64xf32, #tpu.memory_space<vmem>>, %arg9: memref<8x1xf32, #tpu.memory_space<vmem>>, %arg10: memref<8x128xf32, #tpu.memory_space<vmem>>) attributes {dimension_semantics = [#tpu.dimension_semantics<parallel>], iteration_bounds = array<i64: 1>, scalar_prefetch = 0 : i64, scratch_operands = 0 : i64, tpu.core_type = #tpu.core_type<tc>, window_params = [{transform_indices = @transform_0, window_bounds = array<i64: 128, 15>}, {pipeline_mode = #tpu.pipeline_mode<synchronous>, transform_indices = @transform_1, window_bounds = array<i64: 32, 15>}, {pipeline_mode = #tpu.pipeline_mode<synchronous>, transform_indices = @transform_2, window_bounds = array<i64: 32, 1>}, {pipeline_mode = #tpu.pipeline_mode<synchronous>, transform_indices = @transform_3, window_bounds = array<i64: 64, 32>}, {pipeline_mode = #tpu.pipeline_mode<synchronous>, transform_indices = @transform_4, window_bounds = array<i64: 64, 1>}, {pipeline_mode = #tpu.pipeline_mode<synchronous>, transform_indices = @transform_5, window_bounds = array<i64: 64, 64>}, {pipeline_mode = #tpu.pipeline_mode<synchronous>, transform_indices = @transform_6, window_bounds = array<i64: 64, 1>}, {pipeline_mode = #tpu.pipeline_mode<synchronous>, transform_indices = @transform_7, window_bounds = array<i64: 8, 64>}, {pipeline_mode = #tpu.pipeline_mode<synchronous>, transform_indices = @transform_8, window_bounds = array<i64: 8, 1>}, {transform_indices = @transform_9, window_bounds = array<i64: 8, 128>}]} {
    %c0 = arith.constant 0 : index
    %c0_0 = arith.constant 0 : index
    %0 = vector.load %arg1[%c0, %c0_0] : memref<128x15xf32, #tpu.memory_space<vmem>>, vector<128x15xf32>
    %c0_1 = arith.constant 0 : index
    %c0_2 = arith.constant 0 : index
    %1 = vector.load %arg2[%c0_1, %c0_2] : memref<32x15xf32, #tpu.memory_space<vmem>>, vector<32x15xf32>
    %cst = arith.constant dense<0.000000e+00> : vector<32x128xf32>
    %2 = tpu.matmul %1, %0, %cst {dimension_numbers = #tpu.dot_dimension_numbers<[1], [1], [0], [0], [0, 0, 1, 0], [], []>} : vector<32x15xf32>, vector<128x15xf32>, vector<32x128xf32> -> vector<32x128xf32>
    %c0_3 = arith.constant 0 : index
    %c0_4 = arith.constant 0 : index
    %3 = vector.load %arg3[%c0_3, %c0_4] : memref<32x1xf32, #tpu.memory_space<vmem>>, vector<32x1xf32>
    %4 = vector.broadcast %3 : vector<32x1xf32> to vector<32x128xf32>
    %5 = arith.addf %2, %4 : vector<32x128xf32>
    %cst_5 = arith.constant 0.000000e+00 : f32
    %6 = vector.broadcast %cst_5 : f32 to vector<32x128xf32>
    %7 = arith.maximumf %5, %6 : vector<32x128xf32>
    %c0_6 = arith.constant 0 : index
    %c0_7 = arith.constant 0 : index
    %8 = vector.load %arg4[%c0_6, %c0_7] : memref<64x32xf32, #tpu.memory_space<vmem>>, vector<64x32xf32>
    %cst_8 = arith.constant dense<0.000000e+00> : vector<64x128xf32>
    %9 = tpu.matmul %8, %7, %cst_8 {dimension_numbers = #tpu.dot_dimension_numbers<[1], [0], [0], [1], [0, 0, 1, 1], [], []>} : vector<64x32xf32>, vector<32x128xf32>, vector<64x128xf32> -> vector<64x128xf32>
    %c0_9 = arith.constant 0 : index
    %c0_10 = arith.constant 0 : index
    %10 = vector.load %arg5[%c0_9, %c0_10] : memref<64x1xf32, #tpu.memory_space<vmem>>, vector<64x1xf32>
    %11 = vector.broadcast %10 : vector<64x1xf32> to vector<64x128xf32>
    %12 = arith.addf %9, %11 : vector<64x128xf32>
    %cst_11 = arith.constant 0.000000e+00 : f32
    %13 = vector.broadcast %cst_11 : f32 to vector<64x128xf32>
    %14 = arith.maximumf %12, %13 : vector<64x128xf32>
    %c0_12 = arith.constant 0 : index
    %c0_13 = arith.constant 0 : index
    %15 = vector.load %arg6[%c0_12, %c0_13] : memref<64x64xf32, #tpu.memory_space<vmem>>, vector<64x64xf32>
    %cst_14 = arith.constant dense<0.000000e+00> : vector<64x128xf32>
    %16 = tpu.matmul %15, %14, %cst_14 {dimension_numbers = #tpu.dot_dimension_numbers<[1], [0], [0], [1], [0, 0, 1, 1], [], []>} : vector<64x64xf32>, vector<64x128xf32>, vector<64x128xf32> -> vector<64x128xf32>
    %c0_15 = arith.constant 0 : index
    %c0_16 = arith.constant 0 : index
    %17 = vector.load %arg7[%c0_15, %c0_16] : memref<64x1xf32, #tpu.memory_space<vmem>>, vector<64x1xf32>
    %18 = vector.broadcast %17 : vector<64x1xf32> to vector<64x128xf32>
    %19 = arith.addf %16, %18 : vector<64x128xf32>
    %cst_17 = arith.constant 0.000000e+00 : f32
    %20 = vector.broadcast %cst_17 : f32 to vector<64x128xf32>
    %21 = arith.maximumf %19, %20 : vector<64x128xf32>
    %c0_18 = arith.constant 0 : index
    %c0_19 = arith.constant 0 : index
    %22 = vector.load %arg8[%c0_18, %c0_19] : memref<8x64xf32, #tpu.memory_space<vmem>>, vector<8x64xf32>
    %cst_20 = arith.constant dense<0.000000e+00> : vector<8x128xf32>
    %23 = tpu.matmul %22, %21, %cst_20 {dimension_numbers = #tpu.dot_dimension_numbers<[1], [0], [0], [1], [0, 0, 1, 1], [], []>} : vector<8x64xf32>, vector<64x128xf32>, vector<8x128xf32> -> vector<8x128xf32>
    %c0_21 = arith.constant 0 : index
    %c0_22 = arith.constant 0 : index
    %24 = vector.load %arg9[%c0_21, %c0_22] : memref<8x1xf32, #tpu.memory_space<vmem>>, vector<8x1xf32>
    %25 = vector.broadcast %24 : vector<8x1xf32> to vector<8x128xf32>
    %26 = arith.addf %23, %25 : vector<8x128xf32>
    %c0_23 = arith.constant 0 : index
    %c0_24 = arith.constant 0 : index
    %27 = vector.load %arg10[%c0_23, %c0_24] : memref<8x128xf32, #tpu.memory_space<vmem>>, vector<8x128xf32>
    tpu.vector_store %arg10[%c0_23, %c0_24], %26 {strides = array<i32>} : memref<8x128xf32, #tpu.memory_space<vmem>>, vector<8x128xf32>,
    return
  }
  func.func @transform_0(%arg0: i32) -> (i32, i32) {
    %c0_i32 = arith.constant 0 : i32
    %c0_i32_0 = arith.constant 0 : i32
    return %arg0, %c0_i32 : i32, i32
  }
  func.func @transform_1(%arg0: i32) -> (i32, i32) {
    %c0_i32 = arith.constant 0 : i32
    %c0_i32_0 = arith.constant 0 : i32
    %c0_i32_1 = arith.constant 0 : i32
    return %c0_i32, %c0_i32_0 : i32, i32
  }
  func.func @transform_2(%arg0: i32) -> (i32, i32) {
    %c0_i32 = arith.constant 0 : i32
    %c0_i32_0 = arith.constant 0 : i32
    %c0_i32_1 = arith.constant 0 : i32
    return %c0_i32, %c0_i32_0 : i32, i32
  }
  func.func @transform_3(%arg0: i32) -> (i32, i32) {
    %c0_i32 = arith.constant 0 : i32
    %c0_i32_0 = arith.constant 0 : i32
    %c0_i32_1 = arith.constant 0 : i32
    return %c0_i32, %c0_i32_0 : i32, i32
  }
  func.func @transform_4(%arg0: i32) -> (i32, i32) {
    %c0_i32 = arith.constant 0 : i32
    %c0_i32_0 = arith.constant 0 : i32
    %c0_i32_1 = arith.constant 0 : i32
    return %c0_i32, %c0_i32_0 : i32, i32
  }
  func.func @transform_5(%arg0: i32) -> (i32, i32) {
    %c0_i32 = arith.constant 0 : i32
    %c0_i32_0 = arith.constant 0 : i32
    %c0_i32_1 = arith.constant 0 : i32
    return %c0_i32, %c0_i32_0 : i32, i32
  }
  func.func @transform_6(%arg0: i32) -> (i32, i32) {
    %c0_i32 = arith.constant 0 : i32
    %c0_i32_0 = arith.constant 0 : i32
    %c0_i32_1 = arith.constant 0 : i32
    return %c0_i32, %c0_i32_0 : i32, i32
  }
  func.func @transform_7(%arg0: i32) -> (i32, i32) {
    %c0_i32 = arith.constant 0 : i32
    %c0_i32_0 = arith.constant 0 : i32
    %c0_i32_1 = arith.constant 0 : i32
    return %c0_i32, %c0_i32_0 : i32, i32
  }
  func.func @transform_8(%arg0: i32) -> (i32, i32) {
    %c0_i32 = arith.constant 0 : i32
    %c0_i32_0 = arith.constant 0 : i32
    %c0_i32_1 = arith.constant 0 : i32
    return %c0_i32, %c0_i32_0 : i32, i32
  }
  func.func @transform_9(%arg0: i32) -> (i32, i32) {
    %c0_i32 = arith.constant 0 : i32
    %c0_i32_0 = arith.constant 0 : i32
    return %c0_i32, %arg0 : i32, i32
  }
}

</mosaic_0001>

<llo_original>
// kernel: tpu_custom_call.1
$region0: #{tpu_custom_call.1}
  #allocation0 [shape = 'u32[]', space=smem, size = 0x4, offset = 0x4, fixed_abs, tag = 'smem constant byte address 0x4 - core index']
  #allocation1 [shape = 'u32[144,128]{1,0:T(1,128)}', space=vmem, size = 0x12000, scoped, tag = 'internal scratch']
  %s0 = inlined_call_operand.vmem [shape: f32[128,15], index: 0, kind: input, shape index: {}]
  %s1 = inlined_call_operand.vmem [shape: f32[32,15], index: 1, kind: input, shape index: {}]
  %s2 = inlined_call_operand.vmem [shape: f32[32,1], index: 2, kind: input, shape index: {}]
  %s3 = inlined_call_operand.vmem [shape: f32[64,32], index: 3, kind: input, shape index: {}]
  %s4 = inlined_call_operand.vmem [shape: f32[64,1], index: 4, kind: input, shape index: {}]
  %s5 = inlined_call_operand.vmem [shape: f32[64,64], index: 5, kind: input, shape index: {}]
  %s6 = inlined_call_operand.vmem [shape: f32[64,1], index: 6, kind: input, shape index: {}]
  %s7 = inlined_call_operand.vmem [shape: f32[8,64], index: 7, kind: input, shape index: {}]
  %s8 = inlined_call_operand.vmem [shape: f32[8,1], index: 8, kind: input, shape index: {}]
  %s9 = inlined_call_operand.hbm [shape: f32[8,128], index: 9, kind: output, shape index: {}]
  %s10 = sld [smem:[#allocation0]]
  $region46: #{tpu_custom_call.1} parent=0
    _
  %s12 = ssub.s32 1, %s10
  %s13 = scalar_select 0, %s12, %s10
  $region1: #{tpu_custom_call.1} parent=0
    #allocation2 [shape = 'u8[4096]{0}', space=vmem, size = 0x1000, scoped, tag = 'output window, operand 0, single buffered']
    #allocation3 [shape = 's32[1]{0}', space=sflag, size = 0x4, scoped, tag = 'scoped memory for tpu_custom_call.1']
    %14 = vsyncpa [#allocation3], 0
    // Predicated region
    $region2: #{tpu_custom_call.1} parent=1 // pred_check
      _
    $region3: #{tpu_custom_call.1} parent=1 // pred_check_branch
      %16 = sbr.rel (0) target = $region5
    $region4: #{tpu_custom_call.1} parent=1 // pred_region
      _
    $region5: #{tpu_custom_call.1} parent=1 // pred_fallthru
      _
    // Predicated region
    $region6: #{tpu_custom_call.1} parent=1 // pred_check
      _
    $region7: #{tpu_custom_call.1} parent=1 // pred_check_branch
      %18 = sbr.rel (0) target = $region9
    $region8: #{tpu_custom_call.1} parent=1 // pred_region
      _
    $region9: #{tpu_custom_call.1} parent=1 // pred_fallthru
      _
    // Predicated region
    $region10: #{tpu_custom_call.1} parent=1 // pred_check
      _
    $region11: #{tpu_custom_call.1} parent=1 // pred_check_branch
      %20 = sbr.rel (0) target = $region13
    $region12: #{tpu_custom_call.1} parent=1 // pred_region
      _
    $region13: #{tpu_custom_call.1} parent=1 // pred_fallthru
      _
    // Predicated region
    $region14: #{tpu_custom_call.1} parent=1 // pred_check
      _
    $region15: #{tpu_custom_call.1} parent=1 // pred_check_branch
      %22 = sbr.rel (0) target = $region17
    $region16: #{tpu_custom_call.1} parent=1 // pred_region
      _
    $region17: #{tpu_custom_call.1} parent=1 // pred_fallthru
      _
    // Predicated region
    $region18: #{tpu_custom_call.1} parent=1 // pred_check
      _
    $region19: #{tpu_custom_call.1} parent=1 // pred_check_branch
      %24 = sbr.rel (0) target = $region21
    $region20: #{tpu_custom_call.1} parent=1 // pred_region
      _
    $region21: #{tpu_custom_call.1} parent=1 // pred_fallthru
      _
    // Predicated region
    $region22: #{tpu_custom_call.1} parent=1 // pred_check
      _
    $region23: #{tpu_custom_call.1} parent=1 // pred_check_branch
      %26 = sbr.rel (0) target = $region25
    $region24: #{tpu_custom_call.1} parent=1 // pred_region
      _
    $region25: #{tpu_custom_call.1} parent=1 // pred_fallthru
      _
    // Predicated region
    $region26: #{tpu_custom_call.1} parent=1 // pred_check
      _
    $region27: #{tpu_custom_call.1} parent=1 // pred_check_branch
      %28 = sbr.rel (0) target = $region29
    $region28: #{tpu_custom_call.1} parent=1 // pred_region
      _
    $region29: #{tpu_custom_call.1} parent=1 // pred_fallthru
      _
    // Predicated region
    $region30: #{tpu_custom_call.1} parent=1 // pred_check
      _
    $region31: #{tpu_custom_call.1} parent=1 // pred_check_branch
      %30 = sbr.rel (0) target = $region33
    $region32: #{tpu_custom_call.1} parent=1 // pred_region
      _
    $region33: #{tpu_custom_call.1} parent=1 // pred_fallthru
      _
    // Predicated region
    $region34: #{tpu_custom_call.1} parent=1 // pred_check
      _
    $region35: #{tpu_custom_call.1} parent=1 // pred_check_branch
      %32 = sbr.rel (0) target = $region37
    $region36: #{tpu_custom_call.1} parent=1 // pred_region
      _
    $region37: #{tpu_custom_call.1} parent=1 // pred_fallthru
      _
    %v33 = vld [vmem:[%s0] sm:$0xff]
    %v34 = vld [vmem:[%s0 + $0x8] sm:$0xff]
    %v35 = vld [vmem:[%s0 + $0x10] sm:$0xff]
    %v36 = vld [vmem:[%s0 + $0x18] sm:$0xff]
    %v37 = vld [vmem:[%s0 + $0x20] sm:$0xff]
    %v38 = vld [vmem:[%s0 + $0x28] sm:$0xff]
    %v39 = vld [vmem:[%s0 + $0x30] sm:$0xff]
    %v40 = vld [vmem:[%s0 + $0x38] sm:$0xff]
    %v41 = vld [vmem:[%s0 + $0x40] sm:$0xff]
    %v42 = vld [vmem:[%s0 + $0x48] sm:$0xff]
    %v43 = vld [vmem:[%s0 + $0x50] sm:$0xff]
    %v44 = vld [vmem:[%s0 + $0x58] sm:$0xff]
    %v45 = vld [vmem:[%s0 + $0x60] sm:$0xff]
    %v46 = vld [vmem:[%s0 + $0x68] sm:$0xff]
    %v47 = vld [vmem:[%s0 + $0x70] sm:$0xff]
    %v48 = vld [vmem:[%s0 + $0x78] sm:$0xff]
    %v49 = vld [vmem:[%s1] sm:$0xff]
    %v50 = vld [vmem:[%s1 + $0x8] sm:$0xff]
    %v51 = vld [vmem:[%s1 + $0x10] sm:$0xff]
    %v52 = vld [vmem:[%s1 + $0x18] sm:$0xff]
    %v53 = vld [vmem:[%s2] sm:$0xff]
    %v54 = vld [vmem:[%s2 + $0x8] sm:$0xff]
    %v55 = vld [vmem:[%s2 + $0x10] sm:$0xff]
    %v56 = vld [vmem:[%s2 + $0x18] sm:$0xff]
    %58 = vset.pattern.permute.xlu0 0
    %59 = vperm.xlu0 %58, %v53
    %v60 = vpop.permute.xlu0 %59
    %63 = vset.pattern.permute.xlu0 0
    %64 = vperm.xlu0 %63, %v54
    %v65 = vpop.permute.xlu0 %64
    %68 = vset.pattern.permute.xlu0 0
    %69 = vperm.xlu0 %68, %v55
    %v70 = vpop.permute.xlu0 %69
    %73 = vset.pattern.permute.xlu0 0
    %74 = vperm.xlu0 %73, %v56
    %v75 = vpop.permute.xlu0 %74
    %vm77 = vcmask 121856
    %v79 = vsel %vm77, %v49, 0
    %v82 = vsel %vm77, %v50, 0
    %v85 = vsel %vm77, %v51, 0
    %v88 = vsel %vm77, %v52, 0
    %v91 = vsel %vm77, %v33, 0
    %v94 = vsel %vm77, %v34, 0
    %v97 = vsel %vm77, %v35, 0
    %v100 = vsel %vm77, %v36, 0
    %v103 = vsel %vm77, %v37, 0
    %v106 = vsel %vm77, %v38, 0
    %v109 = vsel %vm77, %v39, 0
    %v112 = vsel %vm77, %v40, 0
    %v115 = vsel %vm77, %v41, 0
    %v118 = vsel %vm77, %v42, 0
    %v121 = vsel %vm77, %v43, 0
    %v124 = vsel %vm77, %v44, 0
    %v127 = vsel %vm77, %v45, 0
    %v130 = vsel %vm77, %v46, 0
    %v133 = vsel %vm77, %v47, 0
    %v136 = vsel %vm77, %v48, 0
    %138 = vmatprep.subr.mxu0 0.0
    %139 = vmatpush1.xpose.msra.mxu0 %v91
    %140 = vmatprep.subr.mxu0 0.0
    %141 = vmatpush1.xpose.msra.mxu0 %v94
    %142 = vmatprep.subr.mxu0 0.0
    %143 = vmatpush1.xpose.msra.mxu0 %v97
    %144 = vmatprep.subr.mxu0 0.0
    %145 = vmatpush1.xpose.msra.mxu0 %v100
    %146 = vmatprep.subr.mxu0 0.0
    %147 = vmatpush1.xpose.msra.mxu0 %v103
    %148 = vmatprep.subr.mxu0 0.0
    %149 = vmatpush1.xpose.msra.mxu0 %v106
    %150 = vmatprep.subr.mxu0 0.0
    %151 = vmatpush1.xpose.msra.mxu0 %v109
    %152 = vmatprep.subr.mxu0 0.0
    %153 = vmatpush1.xpose.msra.mxu0 %v112
    %154 = vmatprep.subr.mxu0 0.0
    %155 = vmatpush1.xpose.msra.mxu0 %v115
    %156 = vmatprep.subr.mxu0 0.0
    %157 = vmatpush1.xpose.msra.mxu0 %v118
    %158 = vmatprep.subr.mxu0 0.0
    %159 = vmatpush1.xpose.msra.mxu0 %v121
    %160 = vmatprep.subr.mxu0 0.0
    %161 = vmatpush1.xpose.msra.mxu0 %v124
    %162 = vmatprep.subr.mxu0 0.0
    %163 = vmatpush1.xpose.msra.mxu0 %v127
    %164 = vmatprep.subr.mxu0 0.0
    %165 = vmatpush1.xpose.msra.mxu0 %v130
    %166 = vmatprep.subr.mxu0 0.0
    %167 = vmatpush1.xpose.msra.mxu0 %v133
    %168 = vmatprep.subr.mxu0 0.0
    %169 = vmatpush1.xpose.msra.mxu0 %v136
    %170 = vmatprep.subr.mxu0 0.0
    %171 = vmatpush1.xpose.msra.mxu0 0.0
    %172 = vmatprep.subr.mxu0 0.0
    %173 = vmatpush1.xpose.msra.mxu0 0.0
    %174 = vmatprep.subr.mxu0 0.0
    %175 = vmatpush1.xpose.msra.mxu0 0.0
    %176 = vmatprep.subr.mxu0 0.0
    %177 = vmatpush1.xpose.msra.mxu0 0.0
    %178 = vmatprep.subr.mxu0 0.0
    %179 = vmatpush1.xpose.msra.mxu0 0.0
    %180 = vmatprep.subr.mxu0 0.0
    %181 = vmatpush1.xpose.msra.mxu0 0.0
    %182 = vmatprep.subr.mxu0 0.0
    %183 = vmatpush1.xpose.msra.mxu0 0.0
    %184 = vmatprep.subr.mxu0 0.0
    %185 = vmatpush1.xpose.msra.mxu0 0.0
    %186 = vmatprep.subr.mxu0 0.0
    %187 = vmatpush1.xpose.msra.mxu0 0.0
    %188 = vmatprep.subr.mxu0 0.0
    %189 = vmatpush1.xpose.msra.mxu0 0.0
    %190 = vmatprep.subr.mxu0 0.0
    %191 = vmatpush1.xpose.msra.mxu0 0.0
    %192 = vmatprep.subr.mxu0 0.0
    %193 = vmatpush1.xpose.msra.mxu0 0.0
    %194 = vmatprep.subr.mxu0 0.0
    %195 = vmatpush1.xpose.msra.mxu0 0.0
    %196 = vmatprep.subr.mxu0 0.0
    %197 = vmatpush1.xpose.msra.mxu0 0.0
    %198 = vmatprep.subr.mxu0 0.0
    %199 = vmatpush1.xpose.msra.mxu0 0.0
    %200 = vmatprep.subr.mxu0 0.0
    %201 = vmatpush1.xpose.msra.mxu0 0.0
    %202 = vmatprep.mubr.f32.mxu0 0.0
    %203 = vmatmul.mubr.f32.gmra.mrb[0].mxu0 %v79
    %v204 = vpop.f32.mrb[0].mxu0
    %v205 = vadd.f32 %v60, %v204
    %v206 = vpop.f32.mrb[0].mxu0
    %207 = vmatprep.mubr.f32.mxu0 0.0
    %208 = vmatmul.mubr.f32.gmra.mrb[0].mxu0 %v82
    %v209 = vpop.f32.mrb[0].mxu0
    %v210 = vadd.f32 %v65, %v209
    %v211 = vpop.f32.mrb[0].mxu0
    %212 = vmatprep.mubr.f32.mxu0 0.0
    %213 = vmatmul.mubr.f32.gmra.mrb[0].mxu0 %v85
    %v214 = vpop.f32.mrb[0].mxu0
    %v215 = vadd.f32 %v70, %v214
    %v216 = vpop.f32.mrb[0].mxu0
    %217 = vmatprep.mubr.f32.mxu0 0.0
    %218 = vmatmul.mubr.f32.gmra.mrb[0].mxu0 %v88
    %v219 = vpop.f32.mrb[0].mxu0
    %v220 = vadd.f32 %v75, %v219
    %v221 = vpop.f32.mrb[0].mxu0
    %222 = vdwg.mxu0
    %v223 = vmax.f32 %v205, 0.0
    %v224 = vmax.f32 %v210, 0.0
    %v225 = vmax.f32 %v215, 0.0
    %v226 = vmax.f32 %v220, 0.0
    %v227 = vld [vmem:[%s3] sm:$0xff]
    %v228 = vld [vmem:[%s3 + $0x8] sm:$0xff]
    %v229 = vld [vmem:[%s3 + $0x10] sm:$0xff]
    %v230 = vld [vmem:[%s3 + $0x18] sm:$0xff]
    %v231 = vld [vmem:[%s3 + $0x20] sm:$0xff]
    %v232 = vld [vmem:[%s3 + $0x28] sm:$0xff]
    %v233 = vld [vmem:[%s3 + $0x30] sm:$0xff]
    %v234 = vld [vmem:[%s3 + $0x38] sm:$0xff]
    %v235 = vld [vmem:[%s4] sm:$0xff]
    %v236 = vld [vmem:[%s4 + $0x8] sm:$0xff]
    %v237 = vld [vmem:[%s4 + $0x10] sm:$0xff]
    %v238 = vld [vmem:[%s4 + $0x18] sm:$0xff]
    %v239 = vld [vmem:[%s4 + $0x20] sm:$0xff]
    %v240 = vld [vmem:[%s4 + $0x28] sm:$0xff]
    %v241 = vld [vmem:[%s4 + $0x30] sm:$0xff]
    %v242 = vld [vmem:[%s4 + $0x38] sm:$0xff]
    %244 = vset.pattern.permute.xlu0 0
    %245 = vperm.xlu0 %244, %v235
    %v246 = vpop.permute.xlu0 %245
    %249 = vset.pattern.permute.xlu0 0
    %250 = vperm.xlu0 %249, %v236
    %v251 = vpop.permute.xlu0 %250
    %254 = vset.pattern.permute.xlu0 0
    %255 = vperm.xlu0 %254, %v237
    %v256 = vpop.permute.xlu0 %255
    %259 = vset.pattern.permute.xlu0 0
    %260 = vperm.xlu0 %259, %v238
    %v261 = vpop.permute.xlu0 %260
    %264 = vset.pattern.permute.xlu0 0
    %265 = vperm.xlu0 %264, %v239
    %v266 = vpop.permute.xlu0 %265
    %269 = vset.pattern.permute.xlu0 0
    %270 = vperm.xlu0 %269, %v240
    %v271 = vpop.permute.xlu0 %270
    %274 = vset.pattern.permute.xlu0 0
    %275 = vperm.xlu0 %274, %v241
    %v276 = vpop.permute.xlu0 %275
    %279 = vset.pattern.permute.xlu0 0
    %280 = vperm.xlu0 %279, %v242
    %v281 = vpop.permute.xlu0 %280
    %vm283 = vcmask 261120
    %v285 = vsel %vm283, %v227, 0
    %v288 = vsel %vm283, %v228, 0
    %v291 = vsel %vm283, %v229, 0
    %v294 = vsel %vm283, %v230, 0
    %v297 = vsel %vm283, %v231, 0
    %v300 = vsel %vm283, %v232, 0
    %v303 = vsel %vm283, %v233, 0
    %v306 = vsel %vm283, %v234, 0
    %308 = vmatprep.subr.mxu0 0.0
    %309 = vmatpush1.msra.mxu0 %v223
    %310 = vmatprep.subr.mxu0 0.0
    %311 = vmatpush1.msra.mxu0 %v224
    %312 = vmatprep.subr.mxu0 0.0
    %313 = vmatpush1.msra.mxu0 %v225
    %314 = vmatprep.subr.mxu0 0.0
    %315 = vmatpush1.msra.mxu0 %v226
    %316 = vmatprep.subr.mxu0 0.0
    %317 = vmatpush1.msra.mxu0 0.0
    %318 = vmatprep.subr.mxu0 0.0
    %319 = vmatpush1.msra.mxu0 0.0
    %320 = vmatprep.subr.mxu0 0.0
    %321 = vmatpush1.msra.mxu0 0.0
    %322 = vmatprep.subr.mxu0 0.0
    %323 = vmatpush1.msra.mxu0 0.0
    %324 = vmatprep.subr.mxu0 0.0
    %325 = vmatpush1.msra.mxu0 0.0
    %326 = vmatprep.subr.mxu0 0.0
    %327 = vmatpush1.msra.mxu0 0.0
    %328 = vmatprep.subr.mxu0 0.0
    %329 = vmatpush1.msra.mxu0 0.0
    %330 = vmatprep.subr.mxu0 0.0
    %331 = vmatpush1.msra.mxu0 0.0
    %332 = vmatprep.subr.mxu0 0.0
    %333 = vmatpush1.msra.mxu0 0.0
    %334 = vmatprep.subr.mxu0 0.0
    %335 = vmatpush1.msra.mxu0 0.0
    %336 = vmatprep.subr.mxu0 0.0
    %337 = vmatpush1.msra.mxu0 0.0
    %338 = vmatprep.subr.mxu0 0.0
    %339 = vmatpush1.msra.mxu0 0.0
    %340 = vmatprep.subr.mxu0 0.0
    %341 = vmatpush1.msra.mxu0 0.0
    %342 = vmatprep.subr.mxu0 0.0
    %343 = vmatpush1.msra.mxu0 0.0
    %344 = vmatprep.subr.mxu0 0.0
    %345 = vmatpush1.msra.mxu0 0.0
    %346 = vmatprep.subr.mxu0 0.0
    %347 = vmatpush1.msra.mxu0 0.0
    %348 = vmatprep.subr.mxu0 0.0
    %349 = vmatpush1.msra.mxu0 0.0
    %350 = vmatprep.subr.mxu0 0.0
    %351 = vmatpush1.msra.mxu0 0.0
    %352 = vmatprep.subr.mxu0 0.0
    %353 = vmatpush1.msra.mxu0 0.0
    %354 = vmatprep.subr.mxu0 0.0
    %355 = vmatpush1.msra.mxu0 0.0
    %356 = vmatprep.subr.mxu0 0.0
    %357 = vmatpush1.msra.mxu0 0.0
    %358 = vmatprep.subr.mxu0 0.0
    %359 = vmatpush1.msra.mxu0 0.0
    %360 = vmatprep.subr.mxu0 0.0
    %361 = vmatpush1.msra.mxu0 0.0
    %362 = vmatprep.subr.mxu0 0.0
    %363 = vmatpush1.msra.mxu0 0.0
    %364 = vmatprep.subr.mxu0 0.0
    %365 = vmatpush1.msra.mxu0 0.0
    %366 = vmatprep.subr.mxu0 0.0
    %367 = vmatpush1.msra.mxu0 0.0
    %368 = vmatprep.subr.mxu0 0.0
    %369 = vmatpush1.msra.mxu0 0.0
    %370 = vmatprep.subr.mxu0 0.0
    %371 = vmatpush1.msra.mxu0 0.0
    %372 = vmatprep.mubr.f32.mxu0 0.0
    %373 = vmatmul.mubr.f32.gmra.mrb[0].mxu0 %v285
    %v374 = vpop.f32.mrb[0].mxu0
    %v375 = vadd.f32 %v246, %v374
    %v376 = vpop.f32.mrb[0].mxu0
    %377 = vmatprep.mubr.f32.mxu0 0.0
    %378 = vmatmul.mubr.f32.gmra.mrb[0].mxu0 %v288
    %v379 = vpop.f32.mrb[0].mxu0
    %v380 = vadd.f32 %v251, %v379
    %v381 = vpop.f32.mrb[0].mxu0
    %382 = vmatprep.mubr.f32.mxu0 0.0
    %383 = vmatmul.mubr.f32.gmra.mrb[0].mxu0 %v291
    %v384 = vpop.f32.mrb[0].mxu0
    %v385 = vadd.f32 %v256, %v384
    %v386 = vpop.f32.mrb[0].mxu0
    %387 = vmatprep.mubr.f32.mxu0 0.0
    %388 = vmatmul.mubr.f32.gmra.mrb[0].mxu0 %v294
    %v389 = vpop.f32.mrb[0].mxu0
    %v390 = vadd.f32 %v261, %v389
    %v391 = vpop.f32.mrb[0].mxu0
    %392 = vmatprep.mubr.f32.mxu0 0.0
    %393 = vmatmul.mubr.f32.gmra.mrb[0].mxu0 %v297
    %v394 = vpop.f32.mrb[0].mxu0
    %v395 = vadd.f32 %v266, %v394
    %v396 = vpop.f32.mrb[0].mxu0
    %397 = vmatprep.mubr.f32.mxu0 0.0
    %398 = vmatmul.mubr.f32.gmra.mrb[0].mxu0 %v300
    %v399 = vpop.f32.mrb[0].mxu0
    %v400 = vadd.f32 %v271, %v399
    %v401 = vpop.f32.mrb[0].mxu0
    %402 = vmatprep.mubr.f32.mxu0 0.0
    %403 = vmatmul.mubr.f32.gmra.mrb[0].mxu0 %v303
    %v404 = vpop.f32.mrb[0].mxu0
    %v405 = vadd.f32 %v276, %v404
    %v406 = vpop.f32.mrb[0].mxu0
    %407 = vmatprep.mubr.f32.mxu0 0.0
    %408 = vmatmul.mubr.f32.gmra.mrb[0].mxu0 %v306
    %v409 = vpop.f32.mrb[0].mxu0
    %v410 = vadd.f32 %v281, %v409
    %v411 = vpop.f32.mrb[0].mxu0
    %412 = vdwg.mxu0
    %v413 = vmax.f32 %v375, 0.0
    %v414 = vmax.f32 %v380, 0.0
    %v415 = vmax.f32 %v385, 0.0
    %v416 = vmax.f32 %v390, 0.0
    %v417 = vmax.f32 %v395, 0.0
    %v418 = vmax.f32 %v400, 0.0
    %v419 = vmax.f32 %v405, 0.0
    %v420 = vmax.f32 %v410, 0.0
    %v421 = vld [vmem:[%s5] sm:$0xff]
    %v422 = vld [vmem:[%s5 + $0x8] sm:$0xff]
    %v423 = vld [vmem:[%s5 + $0x10] sm:$0xff]
    %v424 = vld [vmem:[%s5 + $0x18] sm:$0xff]
    %v425 = vld [vmem:[%s5 + $0x20] sm:$0xff]
    %v426 = vld [vmem:[%s5 + $0x28] sm:$0xff]
    %v427 = vld [vmem:[%s5 + $0x30] sm:$0xff]
    %v428 = vld [vmem:[%s5 + $0x38] sm:$0xff]
    %v429 = vld [vmem:[%s6] sm:$0xff]
    %v430 = vld [vmem:[%s6 + $0x8] sm:$0xff]
    %v431 = vld [vmem:[%s6 + $0x10] sm:$0xff]
    %v432 = vld [vmem:[%s6 + $0x18] sm:$0xff]
    %v433 = vld [vmem:[%s6 + $0x20] sm:$0xff]
    %v434 = vld [vmem:[%s6 + $0x28] sm:$0xff]
    %v435 = vld [vmem:[%s6 + $0x30] sm:$0xff]
    %v436 = vld [vmem:[%s6 + $0x38] sm:$0xff]
    %438 = vset.pattern.permute.xlu0 0
    %439 = vperm.xlu0 %438, %v429
    %v440 = vpop.permute.xlu0 %439
    %443 = vset.pattern.permute.xlu0 0
    %444 = vperm.xlu0 %443, %v430
    %v445 = vpop.permute.xlu0 %444
    %448 = vset.pattern.permute.xlu0 0
    %449 = vperm.xlu0 %448, %v431
    %v450 = vpop.permute.xlu0 %449
    %453 = vset.pattern.permute.xlu0 0
    %454 = vperm.xlu0 %453, %v432
    %v455 = vpop.permute.xlu0 %454
    %458 = vset.pattern.permute.xlu0 0
    %459 = vperm.xlu0 %458, %v433
    %v460 = vpop.permute.xlu0 %459
    %463 = vset.pattern.permute.xlu0 0
    %464 = vperm.xlu0 %463, %v434
    %v465 = vpop.permute.xlu0 %464
    %468 = vset.pattern.permute.xlu0 0
    %469 = vperm.xlu0 %468, %v435
    %v470 = vpop.permute.xlu0 %469
    %473 = vset.pattern.permute.xlu0 0
    %474 = vperm.xlu0 %473, %v436
    %v475 = vpop.permute.xlu0 %474
    %vm477 = vcmask 523264
    %v479 = vsel %vm477, %v421, 0
    %v482 = vsel %vm477, %v422, 0
    %v485 = vsel %vm477, %v423, 0
    %v488 = vsel %vm477, %v424, 0
    %v491 = vsel %vm477, %v425, 0
    %v494 = vsel %vm477, %v426, 0
    %v497 = vsel %vm477, %v427, 0
    %v500 = vsel %vm477, %v428, 0
    %502 = vmatprep.subr.mxu0 0.0
    %503 = vmatpush1.msra.mxu0 %v413
    %504 = vmatprep.subr.mxu0 0.0
    %505 = vmatpush1.msra.mxu0 %v414
    %506 = vmatprep.subr.mxu0 0.0
    %507 = vmatpush1.msra.mxu0 %v415
    %508 = vmatprep.subr.mxu0 0.0
    %509 = vmatpush1.msra.mxu0 %v416
    %510 = vmatprep.subr.mxu0 0.0
    %511 = vmatpush1.msra.mxu0 %v417
    %512 = vmatprep.subr.mxu0 0.0
    %513 = vmatpush1.msra.mxu0 %v418
    %514 = vmatprep.subr.mxu0 0.0
    %515 = vmatpush1.msra.mxu0 %v419
    %516 = vmatprep.subr.mxu0 0.0
    %517 = vmatpush1.msra.mxu0 %v420
    %518 = vmatprep.subr.mxu0 0.0
    %519 = vmatpush1.msra.mxu0 0.0
    %520 = vmatprep.subr.mxu0 0.0
    %521 = vmatpush1.msra.mxu0 0.0
    %522 = vmatprep.subr.mxu0 0.0
    %523 = vmatpush1.msra.mxu0 0.0
    %524 = vmatprep.subr.mxu0 0.0
    %525 = vmatpush1.msra.mxu0 0.0
    %526 = vmatprep.subr.mxu0 0.0
    %527 = vmatpush1.msra.mxu0 0.0
    %528 = vmatprep.subr.mxu0 0.0
    %529 = vmatpush1.msra.mxu0 0.0
    %530 = vmatprep.subr.mxu0 0.0
    %531 = vmatpush1.msra.mxu0 0.0
    %532 = vmatprep.subr.mxu0 0.0
    %533 = vmatpush1.msra.mxu0 0.0
    %534 = vmatprep.subr.mxu0 0.0
    %535 = vmatpush1.msra.mxu0 0.0
    %536 = vmatprep.subr.mxu0 0.0
    %537 = vmatpush1.msra.mxu0 0.0
    %538 = vmatprep.subr.mxu0 0.0
    %539 = vmatpush1.msra.mxu0 0.0
    %540 = vmatprep.subr.mxu0 0.0
    %541 = vmatpush1.msra.mxu0 0.0
    %542 = vmatprep.subr.mxu0 0.0
    %543 = vmatpush1.msra.mxu0 0.0
    %544 = vmatprep.subr.mxu0 0.0
    %545 = vmatpush1.msra.mxu0 0.0
    %546 = vmatprep.subr.mxu0 0.0
    %547 = vmatpush1.msra.mxu0 0.0
    %548 = vmatprep.subr.mxu0 0.0
    %549 = vmatpush1.msra.mxu0 0.0
    %550 = vmatprep.subr.mxu0 0.0
    %551 = vmatpush1.msra.mxu0 0.0
    %552 = vmatprep.subr.mxu0 0.0
    %553 = vmatpush1.msra.mxu0 0.0
    %554 = vmatprep.subr.mxu0 0.0
    %555 = vmatpush1.msra.mxu0 0.0
    %556 = vmatprep.subr.mxu0 0.0
    %557 = vmatpush1.msra.mxu0 0.0
    %558 = vmatprep.subr.mxu0 0.0
    %559 = vmatpush1.msra.mxu0 0.0
    %560 = vmatprep.subr.mxu0 0.0
    %561 = vmatpush1.msra.mxu0 0.0
    %562 = vmatprep.subr.mxu0 0.0
    %563 = vmatpush1.msra.mxu0 0.0
    %564 = vmatprep.subr.mxu0 0.0
    %565 = vmatpush1.msra.mxu0 0.0
    %566 = vmatprep.mubr.f32.mxu0 0.0
    %567 = vmatmul.mubr.f32.gmra.mrb[0].mxu0 %v479
    %v568 = vpop.f32.mrb[0].mxu0
    %v569 = vadd.f32 %v440, %v568
    %v570 = vpop.f32.mrb[0].mxu0
    %571 = vmatprep.mubr.f32.mxu0 0.0
    %572 = vmatmul.mubr.f32.gmra.mrb[0].mxu0 %v482
    %v573 = vpop.f32.mrb[0].mxu0
    %v574 = vadd.f32 %v445, %v573
    %v575 = vpop.f32.mrb[0].mxu0
    %576 = vmatprep.mubr.f32.mxu0 0.0
    %577 = vmatmul.mubr.f32.gmra.mrb[0].mxu0 %v485
    %v578 = vpop.f32.mrb[0].mxu0
    %v579 = vadd.f32 %v450, %v578
    %v580 = vpop.f32.mrb[0].mxu0
    %581 = vmatprep.mubr.f32.mxu0 0.0
    %582 = vmatmul.mubr.f32.gmra.mrb[0].mxu0 %v488
    %v583 = vpop.f32.mrb[0].mxu0
    %v584 = vadd.f32 %v455, %v583
    %v585 = vpop.f32.mrb[0].mxu0
    %586 = vmatprep.mubr.f32.mxu0 0.0
    %587 = vmatmul.mubr.f32.gmra.mrb[0].mxu0 %v491
    %v588 = vpop.f32.mrb[0].mxu0
    %v589 = vadd.f32 %v460, %v588
    %v590 = vpop.f32.mrb[0].mxu0
    %591 = vmatprep.mubr.f32.mxu0 0.0
    %592 = vmatmul.mubr.f32.gmra.mrb[0].mxu0 %v494
    %v593 = vpop.f32.mrb[0].mxu0
    %v594 = vadd.f32 %v465, %v593
    %v595 = vpop.f32.mrb[0].mxu0
    %596 = vmatprep.mubr.f32.mxu0 0.0
    %597 = vmatmul.mubr.f32.gmra.mrb[0].mxu0 %v497
    %v598 = vpop.f32.mrb[0].mxu0
    %v599 = vadd.f32 %v470, %v598
    %v600 = vpop.f32.mrb[0].mxu0
    %601 = vmatprep.mubr.f32.mxu0 0.0
    %602 = vmatmul.mubr.f32.gmra.mrb[0].mxu0 %v500
    %v603 = vpop.f32.mrb[0].mxu0
    %v604 = vadd.f32 %v475, %v603
    %v605 = vpop.f32.mrb[0].mxu0
    %606 = vdwg.mxu0
    %v607 = vmax.f32 %v569, 0.0
    %v608 = vmax.f32 %v574, 0.0
    %v609 = vmax.f32 %v579, 0.0
    %v610 = vmax.f32 %v584, 0.0
    %v611 = vmax.f32 %v589, 0.0
    %v612 = vmax.f32 %v594, 0.0
    %v613 = vmax.f32 %v599, 0.0
    %v614 = vmax.f32 %v604, 0.0
    %v615 = vld [vmem:[%s7] sm:$0xff]
    %v616 = vld [vmem:[%s8] sm:$0xff]
    %618 = vset.pattern.permute.xlu0 0
    %619 = vperm.xlu0 %618, %v616
    %v620 = vpop.permute.xlu0 %619
    %v623 = vsel %vm477, %v615, 0
    %625 = vmatprep.subr.mxu0 0.0
    %626 = vmatpush1.msra.mxu0 %v607
    %627 = vmatprep.subr.mxu0 0.0
    %628 = vmatpush1.msra.mxu0 %v608
    %629 = vmatprep.subr.mxu0 0.0
    %630 = vmatpush1.msra.mxu0 %v609
    %631 = vmatprep.subr.mxu0 0.0
    %632 = vmatpush1.msra.mxu0 %v610
    %633 = vmatprep.subr.mxu0 0.0
    %634 = vmatpush1.msra.mxu0 %v611
    %635 = vmatprep.subr.mxu0 0.0
    %636 = vmatpush1.msra.mxu0 %v612
    %637 = vmatprep.subr.mxu0 0.0
    %638 = vmatpush1.msra.mxu0 %v613
    %639 = vmatprep.subr.mxu0 0.0
    %640 = vmatpush1.msra.mxu0 %v614
    %641 = vmatprep.subr.mxu0 0.0
    %642 = vmatpush1.msra.mxu0 0.0
    %643 = vmatprep.subr.mxu0 0.0
    %644 = vmatpush1.msra.mxu0 0.0
    %645 = vmatprep.subr.mxu0 0.0
    %646 = vmatpush1.msra.mxu0 0.0
    %647 = vmatprep.subr.mxu0 0.0
    %648 = vmatpush1.msra.mxu0 0.0
    %649 = vmatprep.subr.mxu0 0.0
    %650 = vmatpush1.msra.mxu0 0.0
    %651 = vmatprep.subr.mxu0 0.0
    %652 = vmatpush1.msra.mxu0 0.0
    %653 = vmatprep.subr.mxu0 0.0
    %654 = vmatpush1.msra.mxu0 0.0
    %655 = vmatprep.subr.mxu0 0.0
    %656 = vmatpush1.msra.mxu0 0.0
    %657 = vmatprep.subr.mxu0 0.0
    %658 = vmatpush1.msra.mxu0 0.0
    %659 = vmatprep.subr.mxu0 0.0
    %660 = vmatpush1.msra.mxu0 0.0
    %661 = vmatprep.subr.mxu0 0.0
    %662 = vmatpush1.msra.mxu0 0.0
    %663 = vmatprep.subr.mxu0 0.0
    %664 = vmatpush1.msra.mxu0 0.0
    %665 = vmatprep.subr.mxu0 0.0
    %666 = vmatpush1.msra.mxu0 0.0
    %667 = vmatprep.subr.mxu0 0.0
    %668 = vmatpush1.msra.mxu0 0.0
    %669 = vmatprep.subr.mxu0 0.0
    %670 = vmatpush1.msra.mxu0 0.0
    %671 = vmatprep.subr.mxu0 0.0
    %672 = vmatpush1.msra.mxu0 0.0
    %673 = vmatprep.subr.mxu0 0.0
    %674 = vmatpush1.msra.mxu0 0.0
    %675 = vmatprep.subr.mxu0 0.0
    %676 = vmatpush1.msra.mxu0 0.0
    %677 = vmatprep.subr.mxu0 0.0
    %678 = vmatpush1.msra.mxu0 0.0
    %679 = vmatprep.subr.mxu0 0.0
    %680 = vmatpush1.msra.mxu0 0.0
    %681 = vmatprep.subr.mxu0 0.0
    %682 = vmatpush1.msra.mxu0 0.0
    %683 = vmatprep.subr.mxu0 0.0
    %684 = vmatpush1.msra.mxu0 0.0
    %685 = vmatprep.subr.mxu0 0.0
    %686 = vmatpush1.msra.mxu0 0.0
    %687 = vmatprep.subr.mxu0 0.0
    %688 = vmatpush1.msra.mxu0 0.0
    %689 = vmatprep.mubr.f32.mxu0 0.0
    %690 = vmatmul.mubr.f32.gmra.mrb[0].mxu0 %v623
    %v691 = vpop.f32.mrb[0].mxu0
    %v692 = vadd.f32 %v620, %v691
    %v693 = vpop.f32.mrb[0].mxu0
    %694 = vdwg.mxu0
    %695 = vst [vmem:[#allocation2] sm:$0xff] %v692
    // Predicated region
    $region38: #{tpu_custom_call.1} parent=1 // pred_check
      _
    $region39: #{tpu_custom_call.1} parent=1 // pred_check_branch
      %697 = sbr.rel (0) target = $region41
    $region40: #{tpu_custom_call.1} parent=1 // pred_region
      %s699 = ssub.s32 128, 128
      %700 = vsyncadd [#allocation3], %s699
      %s702 = sshll.u32 [#allocation2], 4
      %s703 = int_to_ptr.vmem [resolvable:$true] %s702
      %705 = dma.vmem_to_hbm [thread:$0]  %s703, 128, %s9, [#allocation3]
    $region41: #{tpu_custom_call.1} parent=1 // pred_fallthru
      _
    // Predicated region
    $region42: #{tpu_custom_call.1} parent=1 // pred_check
      _
    $region43: #{tpu_custom_call.1} parent=1 // pred_check_branch
      %707 = sbr.rel (0) target = $region45
    $region44: #{tpu_custom_call.1} parent=1 // pred_region
      %708 = dma.done [#allocation3], 128
    $region45: #{tpu_custom_call.1} parent=1 // pred_fallthru
      _
    %709 = vsyncpa [#allocation3], 1

</llo_original>
